<compile_context>
chip_gen: v7x
topology: tpu7x:2x2x1
jax: 0.10.0
libtpu: 0.0.40
codegen_flags: <defaults>
</compile_context>

<pallas_src>
import functools
import numpy as np

import jax
import jax.numpy as jnp
from jax import lax
from jax.experimental import pallas as pl
from jax.experimental.pallas import tpu as pltpu

ELEM_LIST_LEN = 23
ATOM_FDIM = ELEM_LIST_LEN + 6 + 5 + 1   # 35
BOND_FDIM = 5                            # bond add-on -> bond feature dim 40
MAX_NUM_NEIGHBORS = 10


def _round_up(x, m):
    return ((x + m - 1) // m) * m


def _vmem_cap_bytes():
    try:
        return int(pltpu.get_tpu_info().vmem_capacity_bytes)
    except Exception:
        return 64 << 20                 # conservative (v7x-sized) fallback


def _clip_vmem(est_bytes, cap_bytes):
    return int(min(max(2 * est_bytes + (2 << 20), 8 << 20), int(0.8 * cap_bytes)))


# --------------------------------------------------------------------------- #
# Kernel 0 (runs once, tiled over bond rows):
#   base = bond_feat @ W_i + (A_bt @ tree_mess) @ W_h      gm0 = relu(bond@W_i)
# --------------------------------------------------------------------------- #
def _init_kernel(bond_feat_ref, a_bt_ref, tree_ref, w_i_ref, w_h_ref,
                 base_ref, gm0_ref):
    static = jnp.dot(bond_feat_ref[...], w_i_ref[...],
                     preferred_element_type=jnp.float32)
    tree_sum = jnp.dot(a_bt_ref[...].astype(jnp.bfloat16), tree_ref[...],
                       preferred_element_type=jnp.float32)
    tree_term = jnp.dot(tree_sum.astype(jnp.bfloat16), w_h_ref[...],
                        preferred_element_type=jnp.float32)
    base_ref[...] = static + tree_term
    gm0_ref[...] = jnp.maximum(static, 0.0).astype(gm0_ref.dtype)


# --------------------------------------------------------------------------- #
# Kernel 1: message passing, grid = (depth - 1, n_bond_tiles)
#   ghat = gm_old @ W_h   (once per timestep, shared by all bond tiles)
#   gm_new[tile] = relu(base[tile] + A_bg[tile] @ ghat)
# --------------------------------------------------------------------------- #
def _mp_kernel(TB, base_ref, gm0_ref, a_bg_ref, w_h_ref, gm_out_ref,
               ghat_buf, gm_buf):
    t = pl.program_id(0)                     # timestep (outer, sequential)
    i = pl.program_id(1)                     # bond-row tile
    row0 = pl.multiple_of(i * TB, TB)
    rows = pl.ds(row0, TB)

    # Per-timestep shared term, computed on the first tile only.
    @pl.when(i == 0)
    def _compute_ghat():
        @pl.when(t == 0)
        def _():
            ghat_buf[...] = jnp.dot(
                gm0_ref[...], w_h_ref[...],
                preferred_element_type=jnp.float32).astype(ghat_buf.dtype)

        @pl.when(t > 0)
        def _():
            gm_old = gm_buf[lax.rem(t + 1, 2)]            # == (t - 1) % 2
            ghat_buf[...] = jnp.dot(
                gm_old, w_h_ref[...],
                preferred_element_type=jnp.float32).astype(ghat_buf.dtype)

    a_bg = a_bg_ref[...].astype(jnp.bfloat16)             # int8 counts -> bf16
    nbr = jnp.dot(a_bg, ghat_buf[...], preferred_element_type=jnp.float32)
    gm_new = jnp.maximum(base_ref[...] + nbr, 0.0)
    gm_buf[lax.rem(t, 2), rows, :] = gm_new.astype(gm_buf.dtype)

    # Write back to HBM only at the final timestep.
    @pl.when(t == pl.num_programs(0) - 1)
    def _():
        gm_out_ref[...] = gm_new.astype(gm_out_ref.dtype)


# --------------------------------------------------------------------------- #
# Kernel 2: atom aggregation + output projection + per-molecule mean,
#           tiled over atom rows, accumulating into the resident output block.
# --------------------------------------------------------------------------- #
def _readout_kernel(a_at_ref, a_ag_ref, atom_feat_ref, scope_ref, tree_ref,
                    gm_ref, w_oa_ref, w_om_ref, b_o_ref, out_ref):
    i = pl.program_id(0)

    @pl.when(i == 0)
    def _():
        out_ref[...] = jnp.zeros_like(out_ref)

    # atom_nbr = A_at @ tree_mess + A_ag @ graph_message   (no concat copies)
    nbr = (jnp.dot(a_at_ref[...].astype(jnp.bfloat16), tree_ref[...],
                   preferred_element_type=jnp.float32)
           + jnp.dot(a_ag_ref[...].astype(jnp.bfloat16), gm_ref[...],
                     preferred_element_type=jnp.float32))
    # W_o([atom_feat | atom_nbr]) + b, relu   (split dot, no K zero-padding)
    hidden = jnp.maximum(
        jnp.dot(atom_feat_ref[...], w_oa_ref[...],
                preferred_element_type=jnp.float32)
        + jnp.dot(nbr.astype(jnp.bfloat16), w_om_ref[...],
                  preferred_element_type=jnp.float32)
        + b_o_ref[...], 0.0)
    # per-molecule mean kept in f32 end-to-end (tiny matmul).
    out_ref[...] += jnp.dot(scope_ref[...], hidden,
                            preferred_element_type=jnp.float32)


# --------------------------------------------------------------------------- #
# Wrapper
# --------------------------------------------------------------------------- #
def jtmpn_forward(params, atom_feat, bond_feat, adj_atom, adj_bond, scope,
                  tree_mess, depth, *, tile_bonds=256, tile_atoms=256,
                  prefer_resident_adjacency=True):
    NA, AF = atom_feat.shape
    NB, BF = bond_feat.shape
    NT, H = tree_mess.shape
    NM = len(scope)
    bf16 = jnp.bfloat16

    assert tile_bonds % 32 == 0, "tile_bonds must be a multiple of 32"
    assert tile_atoms % 128 == 0, "tile_atoms must be a multiple of 128"

    Hp = max(128, _round_up(H, 128))        # lane-dense hidden dimension
    NTp = max(16, _round_up(NT, 16))
    cap = _vmem_cap_bytes()

    # ---- bond-row tiling -------------------------------------------------------
    TB = int(tile_bonds)
    NBp = _round_up(NB, 32)
    resident_bytes = (NBp * NBp                 # int8 adjacency, fully resident
                      + 8 * NBp * Hp            # gm0 + ghat + 2x gm ping-pong (bf16)
                      + 8 * NBp * Hp            # base f32 (double-buffered)
                      + 4 * NBp * Hp            # out tiles (bf16, double-buffered)
                      + 2 * Hp * Hp)            # W_h
    if NBp <= TB or (prefer_resident_adjacency and resident_bytes <= int(0.5 * cap)):
        TB = NBp                                 # single tile -> A_bg DMA'd once
    else:
        NBp = _round_up(NB, TB)
    n_bond_tiles = NBp // TB

    # ---- atom-row tiling -------------------------------------------------------
    TA = int(tile_atoms)
    NAp = _round_up(NA, 32)
    if NAp <= TA:
        TA = NAp
    else:
        NAp = _round_up(NA, TA)
    n_atom_tiles = NAp // TA

    # ---- padded / typed operands (host/XLA glue) -------------------------------
    def pad2(x, rows, cols, dtype):
        y = jnp.zeros((rows, cols), dtype)
        return y.at[:x.shape[0], :x.shape[1]].set(x.astype(dtype))

    bond_feat_p = pad2(bond_feat, NBp, BF, bf16)
    atom_feat_p = pad2(atom_feat, NAp, AF, bf16)
    tree_p = pad2(tree_mess, NTp, Hp, bf16)

    w_i = pad2(params["W_i"], BF, Hp, bf16)                 # (BF, Hp)
    w_h = pad2(params["W_h"], Hp, Hp, bf16)                 # (Hp, Hp)
    w_oa = pad2(params["W_o_a"], AF, Hp, bf16)              # (AF, Hp)
    w_om = pad2(params["W_o_m"], Hp, Hp, bf16)              # (Hp, Hp)
    b_o = pad2(jnp.asarray(params["b_o"]).reshape(1, H), 1, Hp, jnp.float32)

    # int8 one-hot *count* matrices: gather + sum(dim=1) == counts @ messages.
    def count_matrix(adj, rows_p, col_lo, col_hi, cols_p):
        R, K = adj.shape
        r = jnp.repeat(jnp.arange(R, dtype=jnp.int32), K)
        idx = adj.reshape(-1).astype(jnp.int32)
        ok = (idx >= col_lo) & (idx < col_hi)
        c = jnp.where(ok, idx - col_lo, cols_p)             # out-of-range -> dropped
        m = jnp.zeros((rows_p, cols_p), jnp.int32)
        m = m.at[r, c].add(ok.astype(jnp.int32), mode="drop")
        return m.astype(jnp.int8)                           # counts <= 10, exact

    A_bt = count_matrix(adj_bond, NBp, 0, NT, NTp)          # (NBp, NTp)
    A_bg = count_matrix(adj_bond, NBp, NT, NT + NB, NBp)    # (NBp, NBp)
    A_at = count_matrix(adj_atom, NAp, 0, NT, NTp)          # (NAp, NTp)
    A_ag = count_matrix(adj_atom, NAp, NT, NT + NB, NBp)    # (NAp, NBp)

    # per-molecule averaging matrix, f32 end-to-end.
    S = np.zeros((NM, NAp), np.float32)
    for m, (start, length) in enumerate(scope):
        S[m, start:start + length] = 1.0 / float(length)
    scope_mat = jnp.asarray(S)

    # ---- kernel 0: one-shot precompute of base / gm0 ---------------------------
    est_init = (2 * (TB * BF * 2 + TB * NTp) + (NTp + BF + Hp) * Hp * 2
                + 2 * TB * Hp * (4 + 2))
    base, gm0 = pl.pallas_call(
        _init_kernel,
        out_shape=(jax.ShapeDtypeStruct((NBp, Hp), jnp.float32),
                   jax.ShapeDtypeStruct((NBp, Hp), bf16)),
        grid=(n_bond_tiles,),
        in_specs=[
            pl.BlockSpec((TB, BF),  lambda i: (i, 0)),      # bond features
            pl.BlockSpec((TB, NTp), lambda i: (i, 0)),      # tree-count rows (int8)
            pl.BlockSpec((NTp, Hp), lambda i: (0, 0)),      # tree messages (resident)
            pl.BlockSpec((BF, Hp),  lambda i: (0, 0)),      # W_i (resident)
            pl.BlockSpec((Hp, Hp),  lambda i: (0, 0)),      # W_h (resident)
        ],
        out_specs=(pl.BlockSpec((TB, Hp), lambda i: (i, 0)),
                   pl.BlockSpec((TB, Hp), lambda i: (i, 0))),
        compiler_params=pltpu.CompilerParams(
            dimension_semantics=("parallel",),
            vmem_limit_bytes=_clip_vmem(est_init, cap)),
    )(bond_feat_p, A_bt, tree_p, w_i, w_h)

    # ---- kernel 1: message passing (depth - 1 Jacobi updates) -------------------
    if depth > 1:
        est_mp = (NBp * Hp * 2 + Hp * Hp * 2               # gm0, W_h resident
                  + 3 * NBp * Hp * 2                       # ghat + 2x gm ping-pong
                  + 2 * (TB * Hp * 4 + TB * NBp)           # base + A_bg (double-buffered)
                  + 2 * TB * Hp * 2)                       # out tiles
        gm = pl.pallas_call(
            functools.partial(_mp_kernel, TB),
            out_shape=jax.ShapeDtypeStruct((NBp, Hp), bf16),
            grid=(depth - 1, n_bond_tiles),
            in_specs=[
                pl.BlockSpec((TB, Hp),  lambda t, i: (i, 0)),   # base (residual)
                pl.BlockSpec((NBp, Hp), lambda t, i: (0, 0)),   # gm0 (resident)
                pl.BlockSpec((TB, NBp), lambda t, i: (i, 0)),   # A_bg rows (int8;
                                                                #  resident if 1 tile)
                pl.BlockSpec((Hp, Hp),  lambda t, i: (0, 0)),   # W_h (resident)
            ],
            out_specs=pl.BlockSpec((TB, Hp), lambda t, i: (i, 0)),
            scratch_shapes=[
                pltpu.VMEM((NBp, Hp), bf16),        # ghat = gm_old @ W_h
                pltpu.VMEM((2, NBp, Hp), bf16),     # graph_message ping-pong
            ],
            # NOTE: the Jacobi ping-pong relies on a sequential grid with the
            # timestep axis outermost and scratch persisting across the whole
            # grid -> both axes must stay "arbitrary".
            # TODO(synk): splitting the bond-tile axis across v7x's two
            # TensorCores needs gm/ghat in VMEM_SHARED/CMEM + a core barrier.
            compiler_params=pltpu.CompilerParams(
                dimension_semantics=("arbitrary", "arbitrary"),
                vmem_limit_bytes=_clip_vmem(est_mp, cap)),
        )(base, gm0, A_bg, w_h)
    else:
        gm = gm0

    # ---- kernel 2: atom aggregation + output projection + scope mean -----------
    # TODO(synk): for very large batches (NBp*Hp no longer VMEM-resident) the
    # message dimension of this kernel would also need tiling/accumulation.
    est_ro = ((NTp + NBp) * Hp * 2 + (AF + Hp) * Hp * 2 + Hp * 4 + NM * Hp * 4
              + 2 * (TA * (NTp + NBp) + TA * AF * 2 + NM * TA * 4))
    out = pl.pallas_call(
        _readout_kernel,
        out_shape=jax.ShapeDtypeStruct((NM, Hp), jnp.float32),
        grid=(n_atom_tiles,),
        in_specs=[
            pl.BlockSpec((TA, NTp), lambda i: (i, 0)),      # A_at rows (int8)
            pl.BlockSpec((TA, NBp), lambda i: (i, 0)),      # A_ag rows (int8)
            pl.BlockSpec((TA, AF),  lambda i: (i, 0)),      # atom features
            pl.BlockSpec((NM, TA),  lambda i: (0, i)),      # scope averaging cols (f32)
            pl.BlockSpec((NTp, Hp), lambda i: (0, 0)),      # tree messages (resident)
            pl.BlockSpec((NBp, Hp), lambda i: (0, 0)),      # graph messages (resident)
            pl.BlockSpec((AF, Hp),  lambda i: (0, 0)),      # W_o atom half (resident)
            pl.BlockSpec((Hp, Hp),  lambda i: (0, 0)),      # W_o message half (resident)
            pl.BlockSpec((1, Hp),   lambda i: (0, 0)),      # bias (f32)
        ],
        out_specs=pl.BlockSpec((NM, Hp), lambda i: (0, 0)),
        compiler_params=pltpu.CompilerParams(
            dimension_semantics=("arbitrary",),              # accumulator output
            vmem_limit_bytes=_clip_vmem(est_ro, cap)),
    )(A_at, A_ag, atom_feat_p, scope_mat, tree_p, gm, w_oa, w_om, b_o)

    return out[:, :H]


# --------------------------------------------------------------------------- #
# Reference (NumPy float64 transcription of the torch forward)
# --------------------------------------------------------------------------- #
def jtmpn_reference(params, atom_feat, bond_feat, adj_atom, adj_bond, scope,
                    tree_mess, depth):
    W_i = np.asarray(params["W_i"], np.float64)
    W_h = np.asarray(params["W_h"], np.float64)
    W_o = np.concatenate([np.asarray(params["W_o_a"], np.float64),
                          np.asarray(params["W_o_m"], np.float64)], axis=0)
    b_o = np.asarray(params["b_o"], np.float64)
    af = np.asarray(atom_feat, np.float64)
    bf = np.asarray(bond_feat, np.float64)
    tm = np.asarray(tree_mess, np.float64)
    aa = np.asarray(adj_atom)
    ab = np.asarray(adj_bond)

    static = bf @ W_i
    gm = np.maximum(static, 0.0)
    for _ in range(depth - 1):
        message = np.concatenate([tm, gm], axis=0)
        nbr = message[ab].sum(axis=1)
        gm = np.maximum(static + nbr @ W_h, 0.0)
    message = np.concatenate([tm, gm], axis=0)
    nbr_a = message[aa].sum(axis=1)
    atom_in = np.concatenate([af, nbr_a], axis=1)
    ah = np.maximum(atom_in @ W_o + b_o, 0.0)
    return np.stack([ah[s:s + l].mean(axis=0) for s, l in scope], axis=0)


if __name__ == "__main__":
    hidden_size = 32
    depth = 3

    num_atoms = 30
    num_bonds = 72
    num_tree_mess = 6
    scope = [(0, 9), (9, 11), (20, 10)]     # three molecules, 9 + 11 + 10 atoms

    key = jax.random.PRNGKey(0)
    keys = jax.random.split(key, 10)

    params = {
        "W_i":   0.1 * jax.random.normal(keys[0], (ATOM_FDIM + BOND_FDIM, hidden_size), jnp.float32),
        "W_h":   0.1 * jax.random.normal(keys[1], (hidden_size, hidden_size), jnp.float32),
        "W_o_a": 0.1 * jax.random.normal(keys[2], (ATOM_FDIM, hidden_size), jnp.float32),
        "W_o_m": 0.1 * jax.random.normal(keys[3], (hidden_size, hidden_size), jnp.float32),
        "b_o":   0.1 * jax.random.normal(keys[4], (1, hidden_size), jnp.float32),
    }

    atom_feat = jax.random.normal(keys[5], (num_atoms, ATOM_FDIM), jnp.float32)
    bond_feat = jax.random.normal(keys[6], (num_bonds, ATOM_FDIM + BOND_FDIM), jnp.float32)
    tree_mess = jax.random.normal(keys[7], (num_tree_mess, hidden_size), jnp.float32)
    tree_mess = tree_mess.at[0].set(0.0)    # index 0 == padding message slot (JTNN convention)

    total_msg = num_tree_mess + num_bonds
    adj_atom = jax.random.randint(keys[8], (num_atoms, MAX_NUM_NEIGHBORS),
                                  0, total_msg, dtype=jnp.int32)
    adj_bond = jax.random.randint(keys[9], (num_bonds, MAX_NUM_NEIGHBORS),
                                  0, total_msg, dtype=jnp.int32)

    ref = jtmpn_reference(params, atom_feat, bond_feat, adj_atom, adj_bond,
                          scope, tree_mess, depth)

    # 1) default config: int8 adjacency fully VMEM-resident (single bond tile).
    out_resident = jax.block_until_ready(
        jtmpn_forward(params, atom_feat, bond_feat, adj_atom, adj_bond,
                      scope, tree_mess, depth))
    # 2) streamed multi-tile config (exercises the tiled message-passing path).
    out_streamed = jax.block_until_ready(
        jtmpn_forward(params, atom_feat, bond_feat, adj_atom, adj_bond,
                      scope, tree_mess, depth,
                      tile_bonds=32, prefer_resident_adjacency=False))

    for out in (out_resident, out_streamed):
        assert out.shape == (len(scope), hidden_size)
        # bf16 MXU operands with f32 accumulation; scope mean now in f32.
        np.testing.assert_allclose(np.asarray(out, np.float64), ref,
                                   rtol=3e-2, atol=3e-2)
    print("KERNEL_OK")
</pallas_src>

<mosaic_0001>
module attributes {stable_mosaic.version = 11 : i64} {
  func.func @_init_kernel(%arg0: i32, %arg1: memref<96x40xbf16, #tpu.memory_space<vmem>>, %arg2: memref<96x16xi8, #tpu.memory_space<vmem>>, %arg3: memref<16x128xbf16, #tpu.memory_space<vmem>>, %arg4: memref<40x128xbf16, #tpu.memory_space<vmem>>, %arg5: memref<128x128xbf16, #tpu.memory_space<vmem>>, %arg6: memref<96x128xf32, #tpu.memory_space<vmem>>, %arg7: memref<96x128xbf16, #tpu.memory_space<vmem>>) attributes {dimension_semantics = [#tpu.dimension_semantics<parallel>], iteration_bounds = array<i64: 1>, scalar_prefetch = 0 : i64, scratch_operands = 0 : i64, tpu.core_type = #tpu.core_type<tc>, window_params = [{transform_indices = @transform_0, window_bounds = array<i64: 96, 40>}, {transform_indices = @transform_1, window_bounds = array<i64: 96, 16>}, {pipeline_mode = #tpu.pipeline_mode<synchronous>, transform_indices = @transform_2, window_bounds = array<i64: 16, 128>}, {pipeline_mode = #tpu.pipeline_mode<synchronous>, transform_indices = @transform_3, window_bounds = array<i64: 40, 128>}, {pipeline_mode = #tpu.pipeline_mode<synchronous>, transform_indices = @transform_4, window_bounds = array<i64: 128, 128>}, {transform_indices = @transform_5, window_bounds = array<i64: 96, 128>}, {transform_indices = @transform_6, window_bounds = array<i64: 96, 128>}]} {
    %c0 = arith.constant 0 : index
    %c0_0 = arith.constant 0 : index
    %0 = vector.load %arg1[%c0, %c0_0] : memref<96x40xbf16, #tpu.memory_space<vmem>>, vector<96x40xbf16>
    %c0_1 = arith.constant 0 : index
    %c0_2 = arith.constant 0 : index
    %1 = vector.load %arg4[%c0_1, %c0_2] : memref<40x128xbf16, #tpu.memory_space<vmem>>, vector<40x128xbf16>
    %cst = arith.constant dense<0.000000e+00> : vector<96x128xf32>
    %2 = tpu.matmul %0, %1, %cst {dimension_numbers = #tpu.dot_dimension_numbers<[1], [0], [0], [1], [0, 0, 1, 1], [], []>} : vector<96x40xbf16>, vector<40x128xbf16>, vector<96x128xf32> -> vector<96x128xf32>
    %c0_3 = arith.constant 0 : index
    %c0_4 = arith.constant 0 : index
    %3 = vector.load %arg2[%c0_3, %c0_4] : memref<96x16xi8, #tpu.memory_space<vmem>>, vector<96x16xi8>
    %4 = arith.sitofp %3 : vector<96x16xi8> to vector<96x16xbf16>
    %c0_5 = arith.constant 0 : index
    %c0_6 = arith.constant 0 : index
    %5 = vector.load %arg3[%c0_5, %c0_6] : memref<16x128xbf16, #tpu.memory_space<vmem>>, vector<16x128xbf16>
    %cst_7 = arith.constant dense<0.000000e+00> : vector<96x128xf32>
    %6 = tpu.matmul %4, %5, %cst_7 {dimension_numbers = #tpu.dot_dimension_numbers<[1], [0], [0], [1], [0, 0, 1, 1], [], []>} : vector<96x16xbf16>, vector<16x128xbf16>, vector<96x128xf32> -> vector<96x128xf32>
    %7 = arith.truncf %6 : vector<96x128xf32> to vector<96x128xbf16>
    %c0_8 = arith.constant 0 : index
    %c0_9 = arith.constant 0 : index
    %8 = vector.load %arg5[%c0_8, %c0_9] : memref<128x128xbf16, #tpu.memory_space<vmem>>, vector<128x128xbf16>
    %cst_10 = arith.constant dense<0.000000e+00> : vector<96x128xf32>
    %9 = tpu.matmul %7, %8, %cst_10 {dimension_numbers = #tpu.dot_dimension_numbers<[1], [0], [0], [1], [0, 0, 1, 1], [], []>} : vector<96x128xbf16>, vector<128x128xbf16>, vector<96x128xf32> -> vector<96x128xf32>
    %10 = arith.addf %2, %9 : vector<96x128xf32>
    %c0_11 = arith.constant 0 : index
    %c0_12 = arith.constant 0 : index
    %11 = vector.load %arg6[%c0_11, %c0_12] : memref<96x128xf32, #tpu.memory_space<vmem>>, vector<96x128xf32>
    tpu.vector_store %arg6[%c0_11, %c0_12], %10 {strides = array<i32>} : memref<96x128xf32, #tpu.memory_space<vmem>>, vector<96x128xf32>,
    %cst_13 = arith.constant 0.000000e+00 : f32
    %12 = vector.broadcast %cst_13 : f32 to vector<96x128xf32>
    %13 = arith.maximumf %2, %12 : vector<96x128xf32>
    %14 = arith.truncf %13 : vector<96x128xf32> to vector<96x128xbf16>
    %c0_14 = arith.constant 0 : index
    %c0_15 = arith.constant 0 : index
    %15 = vector.load %arg7[%c0_14, %c0_15] : memref<96x128xbf16, #tpu.memory_space<vmem>>, vector<96x128xbf16>
    tpu.vector_store %arg7[%c0_14, %c0_15], %14 {strides = array<i32>} : memref<96x128xbf16, #tpu.memory_space<vmem>>, vector<96x128xbf16>,
    return
  }
  func.func @transform_0(%arg0: i32) -> (i32, i32) {
    %c0_i32 = arith.constant 0 : i32
    %c0_i32_0 = arith.constant 0 : i32
    return %arg0, %c0_i32 : i32, i32
  }
  func.func @transform_1(%arg0: i32) -> (i32, i32) {
    %c0_i32 = arith.constant 0 : i32
    %c0_i32_0 = arith.constant 0 : i32
    return %arg0, %c0_i32 : i32, i32
  }
  func.func @transform_2(%arg0: i32) -> (i32, i32) {
    %c0_i32 = arith.constant 0 : i32
    %c0_i32_0 = arith.constant 0 : i32
    %c0_i32_1 = arith.constant 0 : i32
    return %c0_i32, %c0_i32_0 : i32, i32
  }
  func.func @transform_3(%arg0: i32) -> (i32, i32) {
    %c0_i32 = arith.constant 0 : i32
    %c0_i32_0 = arith.constant 0 : i32
    %c0_i32_1 = arith.constant 0 : i32
    return %c0_i32, %c0_i32_0 : i32, i32
  }
  func.func @transform_4(%arg0: i32) -> (i32, i32) {
    %c0_i32 = arith.constant 0 : i32
    %c0_i32_0 = arith.constant 0 : i32
    %c0_i32_1 = arith.constant 0 : i32
    return %c0_i32, %c0_i32_0 : i32, i32
  }
  func.func @transform_5(%arg0: i32) -> (i32, i32) {
    %c0_i32 = arith.constant 0 : i32
    %c0_i32_0 = arith.constant 0 : i32
    return %arg0, %c0_i32 : i32, i32
  }
  func.func @transform_6(%arg0: i32) -> (i32, i32) {
    %c0_i32 = arith.constant 0 : i32
    %c0_i32_0 = arith.constant 0 : i32
    return %arg0, %c0_i32 : i32, i32
  }
}

</mosaic_0001>

<llo_original>
// kernel: tpu_custom_call.1
$region0: #{tpu_custom_call.1}
  #allocation0 [shape = 'u32[]', space=smem, size = 0x4, offset = 0x4, fixed_abs, tag = 'smem constant byte address 0x4 - core index']
  #allocation1 [shape = 'u32[144,128]{1,0:T(1,128)}', space=vmem, size = 0x12000, scoped, tag = 'internal scratch']
  %s0 = inlined_call_operand.vmem [shape: bf16[96,40], index: 0, kind: input, shape index: {}]
  %s1 = inlined_call_operand.vmem [shape: s8[96,16], index: 1, kind: input, shape index: {}]
  %s2 = inlined_call_operand.vmem [shape: bf16[16,128], index: 2, kind: input, shape index: {}]
  %s3 = inlined_call_operand.vmem [shape: bf16[40,128], index: 3, kind: input, shape index: {}]
  %s4 = inlined_call_operand.vmem [shape: bf16[128,128], index: 4, kind: input, shape index: {}]
  %s5 = inlined_call_operand.hbm [shape: f32[96,128], index: 5, kind: output, shape index: {0}]
  %s6 = inlined_call_operand.hbm [shape: bf16[96,128], index: 6, kind: output, shape index: {1}]
  %7 = xla_tuple %s5, %s6
  %s8 = sld [smem:[#allocation0]]
  $region38: #{tpu_custom_call.1} parent=0
    _
  %s10 = ssub.s32 1, %s8
  %s11 = scalar_select 0, %s10, %s8
  $region1: #{tpu_custom_call.1} parent=0
    #allocation2 [shape = 'u8[49152]{0}', space=vmem, size = 0xc000, scoped, tag = 'output window, operand 0, single buffered']
    #allocation3 [shape = 's32[1]{0}', space=sflag, size = 0x4, scoped, tag = 'scoped memory for tpu_custom_call.1']
    #allocation4 [shape = 'u8[24576]{0}', space=vmem, size = 0x6000, scoped, tag = 'output window, operand 1, single buffered']
    #allocation5 [shape = 's32[1]{0}', space=sflag, size = 0x4, scoped, tag = 'scoped memory for tpu_custom_call.1']
    %12 = vsyncpa [#allocation3], 0
    %13 = vsyncpa [#allocation5], 0
    // Predicated region
    $region2: #{tpu_custom_call.1} parent=1 // pred_check
      _
    $region3: #{tpu_custom_call.1} parent=1 // pred_check_branch
      %15 = sbr.rel (0) target = $region5
    $region4: #{tpu_custom_call.1} parent=1 // pred_region
      _
    $region5: #{tpu_custom_call.1} parent=1 // pred_fallthru
      _
    // Predicated region
    $region6: #{tpu_custom_call.1} parent=1 // pred_check
      _
    $region7: #{tpu_custom_call.1} parent=1 // pred_check_branch
      %17 = sbr.rel (0) target = $region9
    $region8: #{tpu_custom_call.1} parent=1 // pred_region
      _
    $region9: #{tpu_custom_call.1} parent=1 // pred_fallthru
      _
    // Predicated region
    $region10: #{tpu_custom_call.1} parent=1 // pred_check
      _
    $region11: #{tpu_custom_call.1} parent=1 // pred_check_branch
      %19 = sbr.rel (0) target = $region13
    $region12: #{tpu_custom_call.1} parent=1 // pred_region
      _
    $region13: #{tpu_custom_call.1} parent=1 // pred_fallthru
      _
    // Predicated region
    $region14: #{tpu_custom_call.1} parent=1 // pred_check
      _
    $region15: #{tpu_custom_call.1} parent=1 // pred_check_branch
      %21 = sbr.rel (0) target = $region17
    $region16: #{tpu_custom_call.1} parent=1 // pred_region
      _
    $region17: #{tpu_custom_call.1} parent=1 // pred_fallthru
      _
    // Predicated region
    $region18: #{tpu_custom_call.1} parent=1 // pred_check
      _
    $region19: #{tpu_custom_call.1} parent=1 // pred_check_branch
      %23 = sbr.rel (0) target = $region21
    $region20: #{tpu_custom_call.1} parent=1 // pred_region
      _
    $region21: #{tpu_custom_call.1} parent=1 // pred_fallthru
      _
    %v25 = vld [vmem:[%s0] sm:$0xf]
    %v26 = vld [vmem:[%s0 + $0x4] sm:$0xf]
    %v27 = vld [vmem:[%s0 + $0x8] sm:$0xf]
    %v28 = vld [vmem:[%s0 + $0xc] sm:$0xf]
    %v29 = vld [vmem:[%s0 + $0x10] sm:$0xf]
    %v30 = vld [vmem:[%s0 + $0x14] sm:$0xf]
    %v31 = vld [vmem:[%s0 + $0x18] sm:$0xf]
    %v32 = vld [vmem:[%s0 + $0x1c] sm:$0xf]
    %v33 = vld [vmem:[%s0 + $0x20] sm:$0xf]
    %v34 = vld [vmem:[%s0 + $0x24] sm:$0xf]
    %v35 = vld [vmem:[%s0 + $0x28] sm:$0xf]
    %v36 = vld [vmem:[%s0 + $0x2c] sm:$0xf]
    %v37 = vld [vmem:[%s3] sm:$0xf]
    %v38 = vld [vmem:[%s3 + $0x4] sm:$0xf]
    %v39 = vld [vmem:[%s3 + $0x8] sm:$0xf]
    %v40 = vld [vmem:[%s3 + $0xc] sm:$0xf]
    %v41 = vld [vmem:[%s3 + $0x10] sm:$0xf]
    %v54 = vunpack.c.l.b16 %v25
    %v55 = vunpack.c.l.b16 %v26
    %v56 = vunpack.c.l.b16 %v27
    %v57 = vunpack.c.l.b16 %v28
    %v58 = vunpack.c.l.b16 %v29
    %v59 = vunpack.c.l.b16 %v30
    %v60 = vunpack.c.l.b16 %v31
    %v61 = vunpack.c.l.b16 %v32
    %v62 = vunpack.c.l.b16 %v33
    %v63 = vunpack.c.l.b16 %v34
    %v64 = vunpack.c.l.b16 %v35
    %v65 = vunpack.c.l.b16 %v36
    %v66 = vpack.c.b16 %v55, %v54
    %v67 = vpack.c.b16 %v57, %v56
    %v68 = vpack.c.b16 %v59, %v58
    %v69 = vpack.c.b16 %v61, %v60
    %v70 = vpack.c.b16 %v63, %v62
    %v71 = vpack.c.b16 %v65, %v64
    %v77 = vunpack.c.l.b16 %v37
    %v78 = vunpack.c.l.b16 %v38
    %v79 = vunpack.c.l.b16 %v39
    %v80 = vunpack.c.l.b16 %v40
    %v81 = vunpack.c.l.b16 %v41
    %v82 = vpack.c.b16 %v78, %v77
    %v83 = vpack.c.b16 %v80, %v79
    %v84 = vpack.c.b16 %v81, %v81
    %vm87 = vcmask 326656
    %v89 = vsel %vm87, %v66, 0
    %v92 = vsel %vm87, %v67, 0
    %v95 = vsel %vm87, %v68, 0
    %v98 = vsel %vm87, %v69, 0
    %v101 = vsel %vm87, %v70, 0
    %v104 = vsel %vm87, %v71, 0
    %vm106 = vcmask 1043456
    %v108 = vsel %vm106, %v84, 0
    %110 = vmatprep.subr.bf16.mxu0 0
    %111 = vmatpush1.bf16.msra.mxu0 %v82
    %112 = vmatprep.subr.bf16.mxu0 0
    %113 = vmatpush1.bf16.msra.mxu0 %v83
    %114 = vmatprep.subr.bf16.mxu0 0
    %115 = vmatpush1.bf16.msra.mxu0 %v108
    %116 = vmatprep.subr.bf16.mxu0 0
    %117 = vmatpush1.bf16.msra.mxu0 0
    %118 = vmatprep.subr.bf16.mxu0 0
    %119 = vmatpush1.bf16.msra.mxu0 0
    %120 = vmatprep.subr.bf16.mxu0 0
    %121 = vmatpush1.bf16.msra.mxu0 0
    %122 = vmatprep.subr.bf16.mxu0 0
    %123 = vmatpush1.bf16.msra.mxu0 0
    %124 = vmatprep.subr.bf16.mxu0 0
    %125 = vmatpush1.bf16.msra.mxu0 0
    %126 = vmatprep.subr.bf16.mxu0 0
    %127 = vmatpush1.bf16.msra.mxu0 0
    %128 = vmatprep.subr.bf16.mxu0 0
    %129 = vmatpush1.bf16.msra.mxu0 0
    %130 = vmatprep.subr.bf16.mxu0 0
    %131 = vmatpush1.bf16.msra.mxu0 0
    %132 = vmatprep.subr.bf16.mxu0 0
    %133 = vmatpush1.bf16.msra.mxu0 0
    %134 = vmatprep.subr.bf16.mxu0 0
    %135 = vmatpush1.bf16.msra.mxu0 0
    %136 = vmatprep.subr.bf16.mxu0 0
    %137 = vmatpush1.bf16.msra.mxu0 0
    %138 = vmatprep.subr.bf16.mxu0 0
    %139 = vmatpush1.bf16.msra.mxu0 0
    %140 = vmatprep.subr.bf16.mxu0 0
    %141 = vmatpush1.bf16.msra.mxu0 0
    %142 = vmatprep.mubr.bf16.mxu0 0
    %143 = vmatmul.mubr.bf16.gmra.mrb[0].mxu0 %v89
    %v144 = vpop.f32.mrb[0].mxu0
    %v145 = vadd.f32 0.0, %v144
    %v146 = vpop.f32.mrb[0].mxu0
    %v147 = vpop.f32.mrb[0].mxu0
    %v148 = vadd.f32 0.0, %v147
    %v149 = vpop.f32.mrb[0].mxu0
    %150 = vmatprep.mubr.bf16.mxu0 0
    %151 = vmatmul.mubr.bf16.gmra.mrb[0].mxu0 %v92
    %v152 = vpop.f32.mrb[0].mxu0
    %v153 = vadd.f32 0.0, %v152
    %v154 = vpop.f32.mrb[0].mxu0
    %v155 = vpop.f32.mrb[0].mxu0
    %v156 = vadd.f32 0.0, %v155
    %v157 = vpop.f32.mrb[0].mxu0
    %158 = vmatprep.mubr.bf16.mxu0 0
    %159 = vmatmul.mubr.bf16.gmra.mrb[0].mxu0 %v95
    %v160 = vpop.f32.mrb[0].mxu0
    %v161 = vadd.f32 0.0, %v160
    %v162 = vpop.f32.mrb[0].mxu0
    %v163 = vpop.f32.mrb[0].mxu0
    %v164 = vadd.f32 0.0, %v163
    %v165 = vpop.f32.mrb[0].mxu0
    %166 = vmatprep.mubr.bf16.mxu0 0
    %167 = vmatmul.mubr.bf16.gmra.mrb[0].mxu0 %v98
    %v168 = vpop.f32.mrb[0].mxu0
    %v169 = vadd.f32 0.0, %v168
    %v170 = vpop.f32.mrb[0].mxu0
    %v171 = vpop.f32.mrb[0].mxu0
    %v172 = vadd.f32 0.0, %v171
    %v173 = vpop.f32.mrb[0].mxu0
    %174 = vmatprep.mubr.bf16.mxu0 0
    %175 = vmatmul.mubr.bf16.gmra.mrb[0].mxu0 %v101
    %v176 = vpop.f32.mrb[0].mxu0
    %v177 = vadd.f32 0.0, %v176
    %v178 = vpop.f32.mrb[0].mxu0
    %v179 = vpop.f32.mrb[0].mxu0
    %v180 = vadd.f32 0.0, %v179
    %v181 = vpop.f32.mrb[0].mxu0
    %182 = vmatprep.mubr.bf16.mxu0 0
    %183 = vmatmul.mubr.bf16.gmra.mrb[0].mxu0 %v104
    %v184 = vpop.f32.mrb[0].mxu0
    %v185 = vadd.f32 0.0, %v184
    %v186 = vpop.f32.mrb[0].mxu0
    %v187 = vpop.f32.mrb[0].mxu0
    %v188 = vadd.f32 0.0, %v187
    %v189 = vpop.f32.mrb[0].mxu0
    %190 = vdwg.mxu0
    %v191 = vld [vmem:[%s1] sm:$0xff]
    %v192 = vld [vmem:[%s1 + $0x8] sm:$0xff]
    %v193 = vld [vmem:[%s1 + $0x10] sm:$0xff]
    %v194 = vunpack.c.l.s8.bf16 %v191
    %v195 = vunpack.c.h.s8.bf16 %v191
    %v196 = vunpack.c.l.s8.bf16 %v192
    %v197 = vunpack.c.h.s8.bf16 %v192
    %v198 = vunpack.c.l.s8.bf16 %v193
    %v199 = vunpack.c.h.s8.bf16 %v193
    %v200 = vld [vmem:[%s2] sm:$0xf]
    %v201 = vld [vmem:[%s2 + $0x4] sm:$0xf]
    %v204 = vunpack.c.l.b16 %v200
    %v205 = vunpack.c.l.b16 %v201
    %v206 = vpack.c.b16 %v205, %v204
    %vm208 = vcmask 130048
    %v210 = vsel %vm208, %v194, 0
    %v213 = vsel %vm208, %v195, 0
    %v216 = vsel %vm208, %v196, 0
    %v219 = vsel %vm208, %v197, 0
    %v222 = vsel %vm208, %v198, 0
    %v225 = vsel %vm208, %v199, 0
    %227 = vmatprep.subr.bf16.mxu0 0
    %228 = vmatpush1.bf16.msra.mxu0 %v206
    %229 = vmatprep.subr.bf16.mxu0 0
    %230 = vmatpush1.bf16.msra.mxu0 0
    %231 = vmatprep.subr.bf16.mxu0 0
    %232 = vmatpush1.bf16.msra.mxu0 0
    %233 = vmatprep.subr.bf16.mxu0 0
    %234 = vmatpush1.bf16.msra.mxu0 0
    %235 = vmatprep.subr.bf16.mxu0 0
    %236 = vmatpush1.bf16.msra.mxu0 0
    %237 = vmatprep.subr.bf16.mxu0 0
    %238 = vmatpush1.bf16.msra.mxu0 0
    %239 = vmatprep.subr.bf16.mxu0 0
    %240 = vmatpush1.bf16.msra.mxu0 0
    %241 = vmatprep.subr.bf16.mxu0 0
    %242 = vmatpush1.bf16.msra.mxu0 0
    %243 = vmatprep.subr.bf16.mxu0 0
    %244 = vmatpush1.bf16.msra.mxu0 0
    %245 = vmatprep.subr.bf16.mxu0 0
    %246 = vmatpush1.bf16.msra.mxu0 0
    %247 = vmatprep.subr.bf16.mxu0 0
    %248 = vmatpush1.bf16.msra.mxu0 0
    %249 = vmatprep.subr.bf16.mxu0 0
    %250 = vmatpush1.bf16.msra.mxu0 0
    %251 = vmatprep.subr.bf16.mxu0 0
    %252 = vmatpush1.bf16.msra.mxu0 0
    %253 = vmatprep.subr.bf16.mxu0 0
    %254 = vmatpush1.bf16.msra.mxu0 0
    %255 = vmatprep.subr.bf16.mxu0 0
    %256 = vmatpush1.bf16.msra.mxu0 0
    %257 = vmatprep.subr.bf16.mxu0 0
    %258 = vmatpush1.bf16.msra.mxu0 0
    %259 = vmatprep.mubr.bf16.mxu0 0
    %260 = vmatmul.mubr.bf16.gmra.mrb[0].mxu0 %v210
    %v261 = vpop.f32.mrb[0].mxu0
    %v262 = vadd.f32 0.0, %v261
    %v263 = vpop.f32.mrb[0].mxu0
    %v264 = vpop.f32.mrb[0].mxu0
    %v265 = vadd.f32 0.0, %v264
    %v266 = vpop.f32.mrb[0].mxu0
    %267 = vmatprep.mubr.bf16.mxu0 0
    %268 = vmatmul.mubr.bf16.gmra.mrb[0].mxu0 %v213
    %v269 = vpop.f32.mrb[0].mxu0
    %v270 = vadd.f32 0.0, %v269
    %v271 = vpop.f32.mrb[0].mxu0
    %v272 = vpop.f32.mrb[0].mxu0
    %v273 = vadd.f32 0.0, %v272
    %v274 = vpop.f32.mrb[0].mxu0
    %275 = vmatprep.mubr.bf16.mxu0 0
    %276 = vmatmul.mubr.bf16.gmra.mrb[0].mxu0 %v216
    %v277 = vpop.f32.mrb[0].mxu0
    %v278 = vadd.f32 0.0, %v277
    %v279 = vpop.f32.mrb[0].mxu0
    %v280 = vpop.f32.mrb[0].mxu0
    %v281 = vadd.f32 0.0, %v280
    %v282 = vpop.f32.mrb[0].mxu0
    %283 = vmatprep.mubr.bf16.mxu0 0
    %284 = vmatmul.mubr.bf16.gmra.mrb[0].mxu0 %v219
    %v285 = vpop.f32.mrb[0].mxu0
    %v286 = vadd.f32 0.0, %v285
    %v287 = vpop.f32.mrb[0].mxu0
    %v288 = vpop.f32.mrb[0].mxu0
    %v289 = vadd.f32 0.0, %v288
    %v290 = vpop.f32.mrb[0].mxu0
    %291 = vmatprep.mubr.bf16.mxu0 0
    %292 = vmatmul.mubr.bf16.gmra.mrb[0].mxu0 %v222
    %v293 = vpop.f32.mrb[0].mxu0
    %v294 = vadd.f32 0.0, %v293
    %v295 = vpop.f32.mrb[0].mxu0
    %v296 = vpop.f32.mrb[0].mxu0
    %v297 = vadd.f32 0.0, %v296
    %v298 = vpop.f32.mrb[0].mxu0
    %299 = vmatprep.mubr.bf16.mxu0 0
    %300 = vmatmul.mubr.bf16.gmra.mrb[0].mxu0 %v225
    %v301 = vpop.f32.mrb[0].mxu0
    %v302 = vadd.f32 0.0, %v301
    %v303 = vpop.f32.mrb[0].mxu0
    %v304 = vpop.f32.mrb[0].mxu0
    %v305 = vadd.f32 0.0, %v304
    %v306 = vpop.f32.mrb[0].mxu0
    %307 = vdwg.mxu0
    %v308 = vpack.c.bf16 %v265, %v262
    %v309 = vpack.c.bf16 %v273, %v270
    %v310 = vpack.c.bf16 %v281, %v278
    %v311 = vpack.c.bf16 %v289, %v286
    %v312 = vpack.c.bf16 %v297, %v294
    %v313 = vpack.c.bf16 %v305, %v302
    %v314 = vld [vmem:[%s4] sm:$0xf]
    %v315 = vld [vmem:[%s4 + $0x4] sm:$0xf]
    %v316 = vld [vmem:[%s4 + $0x8] sm:$0xf]
    %v317 = vld [vmem:[%s4 + $0xc] sm:$0xf]
    %v318 = vld [vmem:[%s4 + $0x10] sm:$0xf]
    %v319 = vld [vmem:[%s4 + $0x14] sm:$0xf]
    %v320 = vld [vmem:[%s4 + $0x18] sm:$0xf]
    %v321 = vld [vmem:[%s4 + $0x1c] sm:$0xf]
    %v322 = vld [vmem:[%s4 + $0x20] sm:$0xf]
    %v323 = vld [vmem:[%s4 + $0x24] sm:$0xf]
    %v324 = vld [vmem:[%s4 + $0x28] sm:$0xf]
    %v325 = vld [vmem:[%s4 + $0x2c] sm:$0xf]
    %v326 = vld [vmem:[%s4 + $0x30] sm:$0xf]
    %v327 = vld [vmem:[%s4 + $0x34] sm:$0xf]
    %v328 = vld [vmem:[%s4 + $0x38] sm:$0xf]
    %v329 = vld [vmem:[%s4 + $0x3c] sm:$0xf]
    %v346 = vunpack.c.l.b16 %v314
    %v347 = vunpack.c.l.b16 %v315
    %v348 = vunpack.c.l.b16 %v316
    %v349 = vunpack.c.l.b16 %v317
    %v350 = vunpack.c.l.b16 %v318
    %v351 = vunpack.c.l.b16 %v319
    %v352 = vunpack.c.l.b16 %v320
    %v353 = vunpack.c.l.b16 %v321
    %v354 = vunpack.c.l.b16 %v322
    %v355 = vunpack.c.l.b16 %v323
    %v356 = vunpack.c.l.b16 %v324
    %v357 = vunpack.c.l.b16 %v325
    %v358 = vunpack.c.l.b16 %v326
    %v359 = vunpack.c.l.b16 %v327
    %v360 = vunpack.c.l.b16 %v328
    %v361 = vunpack.c.l.b16 %v329
    %v362 = vpack.c.b16 %v347, %v346
    %v363 = vpack.c.b16 %v349, %v348
    %v364 = vpack.c.b16 %v351, %v350
    %v365 = vpack.c.b16 %v353, %v352
    %v366 = vpack.c.b16 %v355, %v354
    %v367 = vpack.c.b16 %v357, %v356
    %v368 = vpack.c.b16 %v359, %v358
    %v369 = vpack.c.b16 %v361, %v360
    %378 = vmatprep.subr.bf16.mxu0 0
    %379 = vmatpush1.bf16.msra.mxu0 %v362
    %380 = vmatprep.subr.bf16.mxu0 0
    %381 = vmatpush1.bf16.msra.mxu0 %v363
    %382 = vmatprep.subr.bf16.mxu0 0
    %383 = vmatpush1.bf16.msra.mxu0 %v364
    %384 = vmatprep.subr.bf16.mxu0 0
    %385 = vmatpush1.bf16.msra.mxu0 %v365
    %386 = vmatprep.subr.bf16.mxu0 0
    %387 = vmatpush1.bf16.msra.mxu0 %v366
    %388 = vmatprep.subr.bf16.mxu0 0
    %389 = vmatpush1.bf16.msra.mxu0 %v367
    %390 = vmatprep.subr.bf16.mxu0 0
    %391 = vmatpush1.bf16.msra.mxu0 %v368
    %392 = vmatprep.subr.bf16.mxu0 0
    %393 = vmatpush1.bf16.msra.mxu0 %v369
    %394 = vmatprep.subr.bf16.mxu0 0
    %395 = vmatpush1.bf16.msra.mxu0 0
    %396 = vmatprep.subr.bf16.mxu0 0
    %397 = vmatpush1.bf16.msra.mxu0 0
    %398 = vmatprep.subr.bf16.mxu0 0
    %399 = vmatpush1.bf16.msra.mxu0 0
    %400 = vmatprep.subr.bf16.mxu0 0
    %401 = vmatpush1.bf16.msra.mxu0 0
    %402 = vmatprep.subr.bf16.mxu0 0
    %403 = vmatpush1.bf16.msra.mxu0 0
    %404 = vmatprep.subr.bf16.mxu0 0
    %405 = vmatpush1.bf16.msra.mxu0 0
    %406 = vmatprep.subr.bf16.mxu0 0
    %407 = vmatpush1.bf16.msra.mxu0 0
    %408 = vmatprep.subr.bf16.mxu0 0
    %409 = vmatpush1.bf16.msra.mxu0 0
    %410 = vmatprep.mubr.bf16.mxu0 0
    %411 = vmatmul.mubr.bf16.gmra.mrb[0].mxu0 %v308
    %v412 = vpop.f32.mrb[0].mxu0
    %v413 = vadd.f32 0.0, %v412
    %v414 = vpop.f32.mrb[0].mxu0
    %v415 = vpop.f32.mrb[0].mxu0
    %v416 = vadd.f32 0.0, %v415
    %v417 = vpop.f32.mrb[0].mxu0
    %418 = vmatprep.mubr.bf16.mxu0 0
    %419 = vmatmul.mubr.bf16.gmra.mrb[0].mxu0 %v309
    %v420 = vpop.f32.mrb[0].mxu0
    %v421 = vadd.f32 0.0, %v420
    %v422 = vpop.f32.mrb[0].mxu0
    %v423 = vpop.f32.mrb[0].mxu0
    %v424 = vadd.f32 0.0, %v423
    %v425 = vpop.f32.mrb[0].mxu0
    %426 = vmatprep.mubr.bf16.mxu0 0
    %427 = vmatmul.mubr.bf16.gmra.mrb[0].mxu0 %v310
    %v428 = vpop.f32.mrb[0].mxu0
    %v429 = vadd.f32 0.0, %v428
    %v430 = vpop.f32.mrb[0].mxu0
    %v431 = vpop.f32.mrb[0].mxu0
    %v432 = vadd.f32 0.0, %v431
    %v433 = vpop.f32.mrb[0].mxu0
    %434 = vmatprep.mubr.bf16.mxu0 0
    %435 = vmatmul.mubr.bf16.gmra.mrb[0].mxu0 %v311
    %v436 = vpop.f32.mrb[0].mxu0
    %v437 = vadd.f32 0.0, %v436
    %v438 = vpop.f32.mrb[0].mxu0
    %v439 = vpop.f32.mrb[0].mxu0
    %v440 = vadd.f32 0.0, %v439
    %v441 = vpop.f32.mrb[0].mxu0
    %442 = vmatprep.mubr.bf16.mxu0 0
    %443 = vmatmul.mubr.bf16.gmra.mrb[0].mxu0 %v312
    %v444 = vpop.f32.mrb[0].mxu0
    %v445 = vadd.f32 0.0, %v444
    %v446 = vpop.f32.mrb[0].mxu0
    %v447 = vpop.f32.mrb[0].mxu0
    %v448 = vadd.f32 0.0, %v447
    %v449 = vpop.f32.mrb[0].mxu0
    %450 = vmatprep.mubr.bf16.mxu0 0
    %451 = vmatmul.mubr.bf16.gmra.mrb[0].mxu0 %v313
    %v452 = vpop.f32.mrb[0].mxu0
    %v453 = vadd.f32 0.0, %v452
    %v454 = vpop.f32.mrb[0].mxu0
    %v455 = vpop.f32.mrb[0].mxu0
    %v456 = vadd.f32 0.0, %v455
    %v457 = vpop.f32.mrb[0].mxu0
    %458 = vdwg.mxu0
    %v459 = vadd.f32 %v145, %v413
    %v460 = vadd.f32 %v148, %v416
    %v461 = vadd.f32 %v153, %v421
    %v462 = vadd.f32 %v156, %v424
    %v463 = vadd.f32 %v161, %v429
    %v464 = vadd.f32 %v164, %v432
    %v465 = vadd.f32 %v169, %v437
    %v466 = vadd.f32 %v172, %v440
    %v467 = vadd.f32 %v177, %v445
    %v468 = vadd.f32 %v180, %v448
    %v469 = vadd.f32 %v185, %v453
    %v470 = vadd.f32 %v188, %v456
    %471 = vst [vmem:[#allocation2] sm:$0xff] %v459
    %472 = vst [vmem:[#allocation2 + $0x8] sm:$0xff] %v460
    %473 = vst [vmem:[#allocation2 + $0x10] sm:$0xff] %v461
    %474 = vst [vmem:[#allocation2 + $0x18] sm:$0xff] %v462
    %475 = vst [vmem:[#allocation2 + $0x20] sm:$0xff] %v463
    %476 = vst [vmem:[#allocation2 + $0x28] sm:$0xff] %v464
    %477 = vst [vmem:[#allocation2 + $0x30] sm:$0xff] %v465
    %478 = vst [vmem:[#allocation2 + $0x38] sm:$0xff] %v466
    %479 = vst [vmem:[#allocation2 + $0x40] sm:$0xff] %v467
    %480 = vst [vmem:[#allocation2 + $0x48] sm:$0xff] %v468
    %481 = vst [vmem:[#allocation2 + $0x50] sm:$0xff] %v469
    %482 = vst [vmem:[#allocation2 + $0x58] sm:$0xff] %v470
    %v483 = vmax.f32 %v145, 0.0
    %v484 = vmax.f32 %v148, 0.0
    %v485 = vmax.f32 %v153, 0.0
    %v486 = vmax.f32 %v156, 0.0
    %v487 = vmax.f32 %v161, 0.0
    %v488 = vmax.f32 %v164, 0.0
    %v489 = vmax.f32 %v169, 0.0
    %v490 = vmax.f32 %v172, 0.0
    %v491 = vmax.f32 %v177, 0.0
    %v492 = vmax.f32 %v180, 0.0
    %v493 = vmax.f32 %v185, 0.0
    %v494 = vmax.f32 %v188, 0.0
    %v495 = vpack.c.bf16 %v484, %v483
    %v496 = vpack.c.bf16 %v486, %v485
    %v497 = vpack.c.bf16 %v488, %v487
    %v498 = vpack.c.bf16 %v490, %v489
    %v499 = vpack.c.bf16 %v492, %v491
    %v500 = vpack.c.bf16 %v494, %v493
    %v507 = vunpack.c.l.b16 %v495
    %v508 = vunpack.c.h.b16 %v495
    %v509 = vunpack.c.l.b16 %v496
    %v510 = vunpack.c.h.b16 %v496
    %v511 = vunpack.c.l.b16 %v497
    %v512 = vunpack.c.h.b16 %v497
    %v513 = vunpack.c.l.b16 %v498
    %v514 = vunpack.c.h.b16 %v498
    %v515 = vunpack.c.l.b16 %v499
    %v516 = vunpack.c.h.b16 %v499
    %v517 = vunpack.c.l.b16 %v500
    %v518 = vunpack.c.h.b16 %v500
    %v519 = vpack.c.b16 %v507, %v507
    %v520 = vpack.c.b16 %v508, %v508
    %v521 = vpack.c.b16 %v509, %v509
    %v522 = vpack.c.b16 %v510, %v510
    %v523 = vpack.c.b16 %v511, %v511
    %v524 = vpack.c.b16 %v512, %v512
    %v525 = vpack.c.b16 %v513, %v513
    %v526 = vpack.c.b16 %v514, %v514
    %v527 = vpack.c.b16 %v515, %v515
    %v528 = vpack.c.b16 %v516, %v516
    %v529 = vpack.c.b16 %v517, %v517
    %v530 = vpack.c.b16 %v518, %v518
    %543 = vst [vmem:[#allocation4] sm:$0xf] %v519
    %544 = vst [vmem:[#allocation4 + $0x4] sm:$0xf] %v520
    %545 = vst [vmem:[#allocation4 + $0x8] sm:$0xf] %v521
    %546 = vst [vmem:[#allocation4 + $0xc] sm:$0xf] %v522
    %547 = vst [vmem:[#allocation4 + $0x10] sm:$0xf] %v523
    %548 = vst [vmem:[#allocation4 + $0x14] sm:$0xf] %v524
    %549 = vst [vmem:[#allocation4 + $0x18] sm:$0xf] %v525
    %550 = vst [vmem:[#allocation4 + $0x1c] sm:$0xf] %v526
    %551 = vst [vmem:[#allocation4 + $0x20] sm:$0xf] %v527
    %552 = vst [vmem:[#allocation4 + $0x24] sm:$0xf] %v528
    %553 = vst [vmem:[#allocation4 + $0x28] sm:$0xf] %v529
    %554 = vst [vmem:[#allocation4 + $0x2c] sm:$0xf] %v530
    // Predicated region
    $region22: #{tpu_custom_call.1} parent=1 // pred_check
      _
    $region23: #{tpu_custom_call.1} parent=1 // pred_check_branch
      %556 = sbr.rel (0) target = $region25
    $region24: #{tpu_custom_call.1} parent=1 // pred_region
      %s558 = ssub.s32 1536, 1536
      %559 = vsyncadd [#allocation3], %s558
      %s560 = sshll.u32 [#allocation2], 4
      %s561 = int_to_ptr.vmem [resolvable:$true] %s560
      %566 = dma.vmem_to_hbm [thread:$0]  %s561, 1536, %s5, [#allocation3], 128, 128, 8
    $region25: #{tpu_custom_call.1} parent=1 // pred_fallthru
      _
    // Predicated region
    $region26: #{tpu_custom_call.1} parent=1 // pred_check
      _
    $region27: #{tpu_custom_call.1} parent=1 // pred_check_branch
      %568 = sbr.rel (0) target = $region29
    $region28: #{tpu_custom_call.1} parent=1 // pred_region
      %s570 = ssub.s32 768, 768
      %571 = vsyncadd [#allocation5], %s570
      %s572 = sshll.u32 [#allocation4], 4
      %s573 = int_to_ptr.vmem [resolvable:$true] %s572
      %578 = dma.vmem_to_hbm [thread:$0]  %s573, 768, %s6, [#allocation5], 64, 64, 4
    $region29: #{tpu_custom_call.1} parent=1 // pred_fallthru
      _
    // Predicated region
    $region30: #{tpu_custom_call.1} parent=1 // pred_check
      _
    $region31: #{tpu_custom_call.1} parent=1 // pred_check_branch
      %580 = sbr.rel (0) target = $region33
    $region32: #{tpu_custom_call.1} parent=1 // pred_region
      %581 = dma.done [#allocation3], 1536
    $region33: #{tpu_custom_call.1} parent=1 // pred_fallthru
      _
    // Predicated region
    $region34: #{tpu_custom_call.1} parent=1 // pred_check
      _
    $region35: #{tpu_custom_call.1} parent=1 // pred_check_branch
      %583 = sbr.rel (0) target = $region37
    $region36: #{tpu_custom_call.1} parent=1 // pred_region
      %584 = dma.done [#allocation5], 768
    $region37: #{tpu_custom_call.1} parent=1 // pred_fallthru
      _
    %585 = vsyncpa [#allocation3], 1
    %586 = vsyncpa [#allocation5], 1

</llo_original>
